<compile_context>
chip_gen: v7x
topology: tpu7x:2x2x1
jax: 0.10.0
libtpu: 0.0.40
codegen_flags: <defaults>
</compile_context>

<pallas_src>
import jax
import jax.numpy as jnp
from jax import lax
from jax.experimental import pallas as pl
from jax.experimental.pallas import tpu as pltpu


def _pick_tile(dim, unit, max_tile):
    """Largest multiple of `unit` that divides `dim` and is <= max_tile,
    falling back to the full dim (always a legal BlockSpec block size)."""
    if dim % unit != 0:
        return dim
    t = min(max_tile, (dim // unit) * unit)
    t = (t // unit) * unit
    while t > unit and dim % t != 0:
        t -= unit
    return t if dim % t == 0 else dim


def _stats_kernel(x_ref, sum_ref, sq_ref):
    # x_ref: (R_T, L_T) tile. Accumulate row-sum / row-sum-of-squares across
    # the lane-tile grid axis (last grid axis, 'arbitrary').
    j = pl.program_id(1)
    x = x_ref[...].astype(jnp.float32)
    ones = jnp.ones((x.shape[1], 1), jnp.float32)
    # Row reductions on the (otherwise idle) MXU; keeps XLU/VALU slots free.
    s = jnp.dot(x, ones, preferred_element_type=jnp.float32)        # (R_T, 1)
    s2 = jnp.dot(x * x, ones, preferred_element_type=jnp.float32)   # (R_T, 1)

    @pl.when(j == 0)
    def _():
        sum_ref[...] = s
        sq_ref[...] = s2

    @pl.when(j > 0)
    def _():
        sum_ref[...] += s
        sq_ref[...] += s2


def _normalize_kernel(x_ref, scale_ref, shift_ref, o_ref):
    # Folded per-channel affine: y = x * scale + shift (2 VALU ops/element),
    # single write-through to the output tile.
    x = x_ref[...].astype(jnp.float32)
    o_ref[...] = (x * scale_ref[...] + shift_ref[...]).astype(o_ref.dtype)


def batchnorm_forward(x, gamma, beta, eps=1e-5):
    """x: NCHW float32, gamma/beta: (1, C, 1, 1). Returns NCHW output."""
    B, C, H, W = x.shape
    HW = H * W
    rows = B * C
    n_elem = B * HW  # per-channel reduction size

    x2d = x.reshape(rows, HW)  # free reshape of the contiguous NCHW buffer

    # Tile sizes: <= ~2 MiB per f32 block so (in + out) double-buffered stays
    # well under the v7x 32 MiB scoped-VMEM budget (and trivially fits v5e/v6e).
    r_t = _pick_tile(rows, 8, 256)
    l_t = _pick_tile(HW, 128, 2048)
    grid = (rows // r_t, HW // l_t)

    # ---- Pass 1: per-row sum and sum-of-squares -----------------------------
    row_sum, row_sq = pl.pallas_call(
        _stats_kernel,
        out_shape=(
            jax.ShapeDtypeStruct((rows, 1), jnp.float32),
            jax.ShapeDtypeStruct((rows, 1), jnp.float32),
        ),
        grid=grid,
        in_specs=[pl.BlockSpec((r_t, l_t), lambda i, j: (i, j))],
        out_specs=(
            pl.BlockSpec((r_t, 1), lambda i, j: (i, 0)),
            pl.BlockSpec((r_t, 1), lambda i, j: (i, 0)),
        ),
        compiler_params=pltpu.CompilerParams(
            dimension_semantics=("parallel", "arbitrary")),
    )(x2d)

    # ---- Finalize (tiny O(C) glue): fold stats + params into affine ---------
    ch_sum = row_sum.reshape(B, C).sum(axis=0)
    ch_sq = row_sq.reshape(B, C).sum(axis=0)
    mean = ch_sum / n_elem
    # Unbiased variance (torch.var default: divide by N-1), with the global N.
    var = (ch_sq - n_elem * mean * mean) / (n_elem - 1)
    inv_std = lax.rsqrt(var + jnp.float32(eps))
    scale_c = gamma.reshape(C).astype(jnp.float32) * inv_std      # (C,)
    shift_c = beta.reshape(C).astype(jnp.float32) - mean * scale_c
    # Per-(b, c)-row layout matching x2d row order (row = b*C + c).
    scale_rows = jnp.tile(scale_c, B).reshape(rows, 1)
    shift_rows = jnp.tile(shift_c, B).reshape(rows, 1)

    # ---- Pass 2: streamed normalize, y = x * scale + shift ------------------
    out2d = pl.pallas_call(
        _normalize_kernel,
        out_shape=jax.ShapeDtypeStruct((rows, HW), x.dtype),
        grid=grid,
        in_specs=[
            pl.BlockSpec((r_t, l_t), lambda i, j: (i, j)),
            pl.BlockSpec((r_t, 1), lambda i, j: (i, 0)),   # resident across j
            pl.BlockSpec((r_t, 1), lambda i, j: (i, 0)),   # resident across j
        ],
        out_specs=pl.BlockSpec((r_t, l_t), lambda i, j: (i, j)),
        compiler_params=pltpu.CompilerParams(
            dimension_semantics=("parallel", "parallel")),
    )(x2d, scale_rows, shift_rows)

    return out2d.reshape(B, C, H, W)


if __name__ == "__main__":
    key = jax.random.PRNGKey(0)
    B, C, H, W = 2, 32, 8, 8  # num_channels=32 matches the module default
    x = jax.random.normal(key, (B, C, H, W), dtype=jnp.float32)

    # Deterministic parameter init, matching nn.init.ones_/zeros_.
    gamma = jnp.ones((1, C, 1, 1), dtype=jnp.float32)
    beta = jnp.zeros((1, C, 1, 1), dtype=jnp.float32)

    out = batchnorm_forward(x, gamma, beta, eps=1e-5)
    out = jax.block_until_ready(out)

    # Pure-JAX reference (unbiased var, matching torch.var default).
    mean = jnp.mean(x, axis=(0, 2, 3), keepdims=True)
    var = jnp.var(x, axis=(0, 2, 3), keepdims=True, ddof=1)
    ref = (x - mean) / jnp.sqrt(var + 1e-5) * gamma + beta
    assert jnp.allclose(out, ref, atol=1e-4, rtol=1e-4), "mismatch vs reference"

    print("KERNEL_OK")
</pallas_src>

<mosaic_0001>
module attributes {stable_mosaic.version = 11 : i64} {
  func.func @_stats_kernel(%arg0: i32, %arg1: i32, %arg2: memref<64x64xf32, #tpu.memory_space<vmem>>, %arg3: memref<64x1xf32, #tpu.memory_space<vmem>>, %arg4: memref<64x1xf32, #tpu.memory_space<vmem>>) attributes {dimension_semantics = [#tpu.dimension_semantics<parallel>, #tpu.dimension_semantics<arbitrary>], iteration_bounds = array<i64: 1, 1>, scalar_prefetch = 0 : i64, scratch_operands = 0 : i64, tpu.core_type = #tpu.core_type<tc>, window_params = [{transform_indices = @transform_0, window_bounds = array<i64: 64, 64>}, {transform_indices = @transform_1, window_bounds = array<i64: 64, 1>}, {transform_indices = @transform_2, window_bounds = array<i64: 64, 1>}]} {
    %c0 = arith.constant 0 : index
    %c0_0 = arith.constant 0 : index
    %0 = vector.load %arg2[%c0, %c0_0] : memref<64x64xf32, #tpu.memory_space<vmem>>, vector<64x64xf32>
    %cst = arith.constant 1.000000e+00 : f32
    %1 = vector.broadcast %cst : f32 to vector<64x1xf32>
    %cst_1 = arith.constant dense<0.000000e+00> : vector<64x1xf32>
    %2 = tpu.matmul %0, %1, %cst_1 {dimension_numbers = #tpu.dot_dimension_numbers<[1], [0], [0], [1], [0, 0, 1, 1], [], []>} : vector<64x64xf32>, vector<64x1xf32>, vector<64x1xf32> -> vector<64x1xf32>
    %3 = arith.mulf %0, %0 : vector<64x64xf32>
    %cst_2 = arith.constant dense<0.000000e+00> : vector<64x1xf32>
    %4 = tpu.matmul %3, %1, %cst_2 {dimension_numbers = #tpu.dot_dimension_numbers<[1], [0], [0], [1], [0, 0, 1, 1], [], []>} : vector<64x64xf32>, vector<64x1xf32>, vector<64x1xf32> -> vector<64x1xf32>
    %c0_i32 = arith.constant 0 : i32
    %5 = arith.cmpi eq, %arg1, %c0_i32 : i32
    %6 = arith.extui %5 : i1 to i32
    %c0_i32_3 = arith.constant 0 : i32
    %7 = arith.cmpi ne, %6, %c0_i32_3 : i32
    scf.if %7 {
      %c0_6 = arith.constant 0 : index
      %c0_7 = arith.constant 0 : index
      %11 = vector.load %arg3[%c0_6, %c0_7] : memref<64x1xf32, #tpu.memory_space<vmem>>, vector<64x1xf32>
      tpu.vector_store %arg3[%c0_6, %c0_7], %2 {strides = array<i32>} : memref<64x1xf32, #tpu.memory_space<vmem>>, vector<64x1xf32>,
      %c0_8 = arith.constant 0 : index
      %c0_9 = arith.constant 0 : index
      %12 = vector.load %arg4[%c0_8, %c0_9] : memref<64x1xf32, #tpu.memory_space<vmem>>, vector<64x1xf32>
      tpu.vector_store %arg4[%c0_8, %c0_9], %4 {strides = array<i32>} : memref<64x1xf32, #tpu.memory_space<vmem>>, vector<64x1xf32>,
    } else {
    }
    %c0_i32_4 = arith.constant 0 : i32
    %8 = arith.cmpi sgt, %arg1, %c0_i32_4 : i32
    %9 = arith.extui %8 : i1 to i32
    %c0_i32_5 = arith.constant 0 : i32
    %10 = arith.cmpi ne, %9, %c0_i32_5 : i32
    scf.if %10 {
      %c0_6 = arith.constant 0 : index
      %c0_7 = arith.constant 0 : index
      %11 = vector.load %arg3[%c0_6, %c0_7] : memref<64x1xf32, #tpu.memory_space<vmem>>, vector<64x1xf32>
      %12 = arith.addf %11, %2 : vector<64x1xf32>
      %c0_8 = arith.constant 0 : index
      %c0_9 = arith.constant 0 : index
      %13 = vector.load %arg3[%c0_8, %c0_9] : memref<64x1xf32, #tpu.memory_space<vmem>>, vector<64x1xf32>
      tpu.vector_store %arg3[%c0_8, %c0_9], %12 {strides = array<i32>} : memref<64x1xf32, #tpu.memory_space<vmem>>, vector<64x1xf32>,
      %c0_10 = arith.constant 0 : index
      %c0_11 = arith.constant 0 : index
      %14 = vector.load %arg4[%c0_10, %c0_11] : memref<64x1xf32, #tpu.memory_space<vmem>>, vector<64x1xf32>
      %15 = arith.addf %14, %4 : vector<64x1xf32>
      %c0_12 = arith.constant 0 : index
      %c0_13 = arith.constant 0 : index
      %16 = vector.load %arg4[%c0_12, %c0_13] : memref<64x1xf32, #tpu.memory_space<vmem>>, vector<64x1xf32>
      tpu.vector_store %arg4[%c0_12, %c0_13], %15 {strides = array<i32>} : memref<64x1xf32, #tpu.memory_space<vmem>>, vector<64x1xf32>,
    } else {
    }
    return
  }
  func.func @transform_0(%arg0: i32, %arg1: i32) -> (i32, i32) {
    %c0_i32 = arith.constant 0 : i32
    return %arg0, %arg1 : i32, i32
  }
  func.func @transform_1(%arg0: i32, %arg1: i32) -> (i32, i32) {
    %c0_i32 = arith.constant 0 : i32
    %c0_i32_0 = arith.constant 0 : i32
    return %arg0, %c0_i32 : i32, i32
  }
  func.func @transform_2(%arg0: i32, %arg1: i32) -> (i32, i32) {
    %c0_i32 = arith.constant 0 : i32
    %c0_i32_0 = arith.constant 0 : i32
    return %arg0, %c0_i32 : i32, i32
  }
}

</mosaic_0001>

<llo_original>
// kernel: tpu_custom_call.1
$region0: #{tpu_custom_call.1}
  #allocation0 [shape = 'u32[]', space=smem, size = 0x4, offset = 0x4, fixed_abs, tag = 'smem constant byte address 0x4 - core index']
  #allocation1 [shape = 'u32[144,128]{1,0:T(1,128)}', space=vmem, size = 0x12000, scoped, tag = 'internal scratch']
  %s0 = inlined_call_operand.hbm [shape: f32[64,64], index: 0, kind: input, shape index: {}]
  %s1 = inlined_call_operand.vmem [shape: f32[64,1], index: 1, kind: output, shape index: {0}]
  %s2 = inlined_call_operand.vmem [shape: f32[64,1], index: 2, kind: output, shape index: {1}]
  %3 = xla_tuple %s1, %s2
  %s4 = sld [smem:[#allocation0]]
  $region34: #{tpu_custom_call.1} parent=0
    _
  %s6 = ssub.s32 1, %s4
  %s7 = scalar_select 0, %s6, %s4
  $region1: #{tpu_custom_call.1} parent=0
    #allocation2 [shape = 'u8[32768]{0}', space=vmem, size = 0x8000, scoped, tag = 'input window, operand 0, single buffered']
    #allocation3 [shape = 's32[1]{0}', space=sflag, size = 0x4, scoped, tag = 'scoped memory for tpu_custom_call.1']
    %8 = vsyncpa [#allocation3], 0
    // Predicated region
    $region2: #{tpu_custom_call.1} parent=1 // pred_check
      _
    $region3: #{tpu_custom_call.1} parent=1 // pred_check_branch
      %10 = sbr.rel (0) target = $region5
    $region4: #{tpu_custom_call.1} parent=1 // pred_region
      %s12 = ssub.s32 1024, 1024
      %13 = vsyncadd [#allocation3], %s12
      %s14 = sshll.u32 [#allocation2], 4
      %s15 = int_to_ptr.vmem [resolvable:$true] %s14
      %20 = dma.hbm_to_vmem [thread:$0]  %s0, 1024, %s15, [#allocation3], 128, 128, 8
    $region5: #{tpu_custom_call.1} parent=1 // pred_fallthru
      _
    // Predicated region
    $region6: #{tpu_custom_call.1} parent=1 // pred_check
      _
    $region7: #{tpu_custom_call.1} parent=1 // pred_check_branch
      %22 = sbr.rel (0) target = $region9
    $region8: #{tpu_custom_call.1} parent=1 // pred_region
      %23 = dma.done [#allocation3], 1024
    $region9: #{tpu_custom_call.1} parent=1 // pred_fallthru
      _
    %v24 = vld [vmem:[#allocation2] sm:$0xff]
    %v25 = vld [vmem:[#allocation2 + $0x8] sm:$0xff]
    %v26 = vld [vmem:[#allocation2 + $0x10] sm:$0xff]
    %v27 = vld [vmem:[#allocation2 + $0x18] sm:$0xff]
    %v28 = vld [vmem:[#allocation2 + $0x20] sm:$0xff]
    %v29 = vld [vmem:[#allocation2 + $0x28] sm:$0xff]
    %v30 = vld [vmem:[#allocation2 + $0x30] sm:$0xff]
    %v31 = vld [vmem:[#allocation2 + $0x38] sm:$0xff]
    %vm32 = vcmask 523264
    %v34 = vsel %vm32, %v24, 0
    %v37 = vsel %vm32, %v25, 0
    %v40 = vsel %vm32, %v26, 0
    %v43 = vsel %vm32, %v27, 0
    %v46 = vsel %vm32, %v28, 0
    %v49 = vsel %vm32, %v29, 0
    %v52 = vsel %vm32, %v30, 0
    %v55 = vsel %vm32, %v31, 0
    %57 = vmatprep.subr.mxu0 0.0
    %58 = vmatpush1.msra.mxu0 1.0
    %59 = vmatprep.subr.mxu0 0.0
    %60 = vmatpush1.msra.mxu0 1.0
    %61 = vmatprep.subr.mxu0 0.0
    %62 = vmatpush1.msra.mxu0 1.0
    %63 = vmatprep.subr.mxu0 0.0
    %64 = vmatpush1.msra.mxu0 1.0
    %65 = vmatprep.subr.mxu0 0.0
    %66 = vmatpush1.msra.mxu0 1.0
    %67 = vmatprep.subr.mxu0 0.0
    %68 = vmatpush1.msra.mxu0 1.0
    %69 = vmatprep.subr.mxu0 0.0
    %70 = vmatpush1.msra.mxu0 1.0
    %71 = vmatprep.subr.mxu0 0.0
    %72 = vmatpush1.msra.mxu0 1.0
    %73 = vmatprep.subr.mxu0 0.0
    %74 = vmatpush1.msra.mxu0 0.0
    %75 = vmatprep.subr.mxu0 0.0
    %76 = vmatpush1.msra.mxu0 0.0
    %77 = vmatprep.subr.mxu0 0.0
    %78 = vmatpush1.msra.mxu0 0.0
    %79 = vmatprep.subr.mxu0 0.0
    %80 = vmatpush1.msra.mxu0 0.0
    %81 = vmatprep.subr.mxu0 0.0
    %82 = vmatpush1.msra.mxu0 0.0
    %83 = vmatprep.subr.mxu0 0.0
    %84 = vmatpush1.msra.mxu0 0.0
    %85 = vmatprep.subr.mxu0 0.0
    %86 = vmatpush1.msra.mxu0 0.0
    %87 = vmatprep.subr.mxu0 0.0
    %88 = vmatpush1.msra.mxu0 0.0
    %89 = vmatprep.subr.mxu0 0.0
    %90 = vmatpush1.msra.mxu0 0.0
    %91 = vmatprep.subr.mxu0 0.0
    %92 = vmatpush1.msra.mxu0 0.0
    %93 = vmatprep.subr.mxu0 0.0
    %94 = vmatpush1.msra.mxu0 0.0
    %95 = vmatprep.subr.mxu0 0.0
    %96 = vmatpush1.msra.mxu0 0.0
    %97 = vmatprep.subr.mxu0 0.0
    %98 = vmatpush1.msra.mxu0 0.0
    %99 = vmatprep.subr.mxu0 0.0
    %100 = vmatpush1.msra.mxu0 0.0
    %101 = vmatprep.subr.mxu0 0.0
    %102 = vmatpush1.msra.mxu0 0.0
    %103 = vmatprep.subr.mxu0 0.0
    %104 = vmatpush1.msra.mxu0 0.0
    %105 = vmatprep.subr.mxu0 0.0
    %106 = vmatpush1.msra.mxu0 0.0
    %107 = vmatprep.subr.mxu0 0.0
    %108 = vmatpush1.msra.mxu0 0.0
    %109 = vmatprep.subr.mxu0 0.0
    %110 = vmatpush1.msra.mxu0 0.0
    %111 = vmatprep.subr.mxu0 0.0
    %112 = vmatpush1.msra.mxu0 0.0
    %113 = vmatprep.subr.mxu0 0.0
    %114 = vmatpush1.msra.mxu0 0.0
    %115 = vmatprep.subr.mxu0 0.0
    %116 = vmatpush1.msra.mxu0 0.0
    %117 = vmatprep.subr.mxu0 0.0
    %118 = vmatpush1.msra.mxu0 0.0
    %119 = vmatprep.subr.mxu0 0.0
    %120 = vmatpush1.msra.mxu0 0.0
    %121 = vmatprep.mubr.f32.mxu0 0.0
    %122 = vmatmul.mubr.f32.gmra.mrb[0].mxu0 %v34
    %v123 = vpop.f32.mrb[0].mxu0
    %v124 = vadd.f32 0.0, %v123
    %v125 = vpop.f32.mrb[0].mxu0
    %126 = vmatprep.mubr.f32.mxu0 0.0
    %127 = vmatmul.mubr.f32.gmra.mrb[0].mxu0 %v37
    %v128 = vpop.f32.mrb[0].mxu0
    %v129 = vadd.f32 0.0, %v128
    %v130 = vpop.f32.mrb[0].mxu0
    %131 = vmatprep.mubr.f32.mxu0 0.0
    %132 = vmatmul.mubr.f32.gmra.mrb[0].mxu0 %v40
    %v133 = vpop.f32.mrb[0].mxu0
    %v134 = vadd.f32 0.0, %v133
    %v135 = vpop.f32.mrb[0].mxu0
    %136 = vmatprep.mubr.f32.mxu0 0.0
    %137 = vmatmul.mubr.f32.gmra.mrb[0].mxu0 %v43
    %v138 = vpop.f32.mrb[0].mxu0
    %v139 = vadd.f32 0.0, %v138
    %v140 = vpop.f32.mrb[0].mxu0
    %141 = vmatprep.mubr.f32.mxu0 0.0
    %142 = vmatmul.mubr.f32.gmra.mrb[0].mxu0 %v46
    %v143 = vpop.f32.mrb[0].mxu0
    %v144 = vadd.f32 0.0, %v143
    %v145 = vpop.f32.mrb[0].mxu0
    %146 = vmatprep.mubr.f32.mxu0 0.0
    %147 = vmatmul.mubr.f32.gmra.mrb[0].mxu0 %v49
    %v148 = vpop.f32.mrb[0].mxu0
    %v149 = vadd.f32 0.0, %v148
    %v150 = vpop.f32.mrb[0].mxu0
    %151 = vmatprep.mubr.f32.mxu0 0.0
    %152 = vmatmul.mubr.f32.gmra.mrb[0].mxu0 %v52
    %v153 = vpop.f32.mrb[0].mxu0
    %v154 = vadd.f32 0.0, %v153
    %v155 = vpop.f32.mrb[0].mxu0
    %156 = vmatprep.mubr.f32.mxu0 0.0
    %157 = vmatmul.mubr.f32.gmra.mrb[0].mxu0 %v55
    %v158 = vpop.f32.mrb[0].mxu0
    %v159 = vadd.f32 0.0, %v158
    %v160 = vpop.f32.mrb[0].mxu0
    %161 = vdwg.mxu0
    %v162 = vmul.f32 %v24, %v24
    %v163 = vmul.f32 %v25, %v25
    %v164 = vmul.f32 %v26, %v26
    %v165 = vmul.f32 %v27, %v27
    %v166 = vmul.f32 %v28, %v28
    %v167 = vmul.f32 %v29, %v29
    %v168 = vmul.f32 %v30, %v30
    %v169 = vmul.f32 %v31, %v31
    %v171 = vsel %vm32, %v162, 0
    %v174 = vsel %vm32, %v163, 0
    %v177 = vsel %vm32, %v164, 0
    %v180 = vsel %vm32, %v165, 0
    %v183 = vsel %vm32, %v166, 0
    %v186 = vsel %vm32, %v167, 0
    %v189 = vsel %vm32, %v168, 0
    %v192 = vsel %vm32, %v169, 0
    %194 = vmatprep.subr.mxu0 0.0
    %195 = vmatpush1.msra.mxu0 1.0
    %196 = vmatprep.subr.mxu0 0.0
    %197 = vmatpush1.msra.mxu0 1.0
    %198 = vmatprep.subr.mxu0 0.0
    %199 = vmatpush1.msra.mxu0 1.0
    %200 = vmatprep.subr.mxu0 0.0
    %201 = vmatpush1.msra.mxu0 1.0
    %202 = vmatprep.subr.mxu0 0.0
    %203 = vmatpush1.msra.mxu0 1.0
    %204 = vmatprep.subr.mxu0 0.0
    %205 = vmatpush1.msra.mxu0 1.0
    %206 = vmatprep.subr.mxu0 0.0
    %207 = vmatpush1.msra.mxu0 1.0
    %208 = vmatprep.subr.mxu0 0.0
    %209 = vmatpush1.msra.mxu0 1.0
    %210 = vmatprep.subr.mxu0 0.0
    %211 = vmatpush1.msra.mxu0 0.0
    %212 = vmatprep.subr.mxu0 0.0
    %213 = vmatpush1.msra.mxu0 0.0
    %214 = vmatprep.subr.mxu0 0.0
    %215 = vmatpush1.msra.mxu0 0.0
    %216 = vmatprep.subr.mxu0 0.0
    %217 = vmatpush1.msra.mxu0 0.0
    %218 = vmatprep.subr.mxu0 0.0
    %219 = vmatpush1.msra.mxu0 0.0
    %220 = vmatprep.subr.mxu0 0.0
    %221 = vmatpush1.msra.mxu0 0.0
    %222 = vmatprep.subr.mxu0 0.0
    %223 = vmatpush1.msra.mxu0 0.0
    %224 = vmatprep.subr.mxu0 0.0
    %225 = vmatpush1.msra.mxu0 0.0
    %226 = vmatprep.subr.mxu0 0.0
    %227 = vmatpush1.msra.mxu0 0.0
    %228 = vmatprep.subr.mxu0 0.0
    %229 = vmatpush1.msra.mxu0 0.0
    %230 = vmatprep.subr.mxu0 0.0
    %231 = vmatpush1.msra.mxu0 0.0
    %232 = vmatprep.subr.mxu0 0.0
    %233 = vmatpush1.msra.mxu0 0.0
    %234 = vmatprep.subr.mxu0 0.0
    %235 = vmatpush1.msra.mxu0 0.0
    %236 = vmatprep.subr.mxu0 0.0
    %237 = vmatpush1.msra.mxu0 0.0
    %238 = vmatprep.subr.mxu0 0.0
    %239 = vmatpush1.msra.mxu0 0.0
    %240 = vmatprep.subr.mxu0 0.0
    %241 = vmatpush1.msra.mxu0 0.0
    %242 = vmatprep.subr.mxu0 0.0
    %243 = vmatpush1.msra.mxu0 0.0
    %244 = vmatprep.subr.mxu0 0.0
    %245 = vmatpush1.msra.mxu0 0.0
    %246 = vmatprep.subr.mxu0 0.0
    %247 = vmatpush1.msra.mxu0 0.0
    %248 = vmatprep.subr.mxu0 0.0
    %249 = vmatpush1.msra.mxu0 0.0
    %250 = vmatprep.subr.mxu0 0.0
    %251 = vmatpush1.msra.mxu0 0.0
    %252 = vmatprep.subr.mxu0 0.0
    %253 = vmatpush1.msra.mxu0 0.0
    %254 = vmatprep.subr.mxu0 0.0
    %255 = vmatpush1.msra.mxu0 0.0
    %256 = vmatprep.subr.mxu0 0.0
    %257 = vmatpush1.msra.mxu0 0.0
    %258 = vmatprep.mubr.f32.mxu0 0.0
    %259 = vmatmul.mubr.f32.gmra.mrb[0].mxu0 %v171
    %v260 = vpop.f32.mrb[0].mxu0
    %v261 = vadd.f32 0.0, %v260
    %v262 = vpop.f32.mrb[0].mxu0
    %263 = vmatprep.mubr.f32.mxu0 0.0
    %264 = vmatmul.mubr.f32.gmra.mrb[0].mxu0 %v174
    %v265 = vpop.f32.mrb[0].mxu0
    %v266 = vadd.f32 0.0, %v265
    %v267 = vpop.f32.mrb[0].mxu0
    %268 = vmatprep.mubr.f32.mxu0 0.0
    %269 = vmatmul.mubr.f32.gmra.mrb[0].mxu0 %v177
    %v270 = vpop.f32.mrb[0].mxu0
    %v271 = vadd.f32 0.0, %v270
    %v272 = vpop.f32.mrb[0].mxu0
    %273 = vmatprep.mubr.f32.mxu0 0.0
    %274 = vmatmul.mubr.f32.gmra.mrb[0].mxu0 %v180
    %v275 = vpop.f32.mrb[0].mxu0
    %v276 = vadd.f32 0.0, %v275
    %v277 = vpop.f32.mrb[0].mxu0
    %278 = vmatprep.mubr.f32.mxu0 0.0
    %279 = vmatmul.mubr.f32.gmra.mrb[0].mxu0 %v183
    %v280 = vpop.f32.mrb[0].mxu0
    %v281 = vadd.f32 0.0, %v280
    %v282 = vpop.f32.mrb[0].mxu0
    %283 = vmatprep.mubr.f32.mxu0 0.0
    %284 = vmatmul.mubr.f32.gmra.mrb[0].mxu0 %v186
    %v285 = vpop.f32.mrb[0].mxu0
    %v286 = vadd.f32 0.0, %v285
    %v287 = vpop.f32.mrb[0].mxu0
    %288 = vmatprep.mubr.f32.mxu0 0.0
    %289 = vmatmul.mubr.f32.gmra.mrb[0].mxu0 %v189
    %v290 = vpop.f32.mrb[0].mxu0
    %v291 = vadd.f32 0.0, %v290
    %v292 = vpop.f32.mrb[0].mxu0
    %293 = vmatprep.mubr.f32.mxu0 0.0
    %294 = vmatmul.mubr.f32.gmra.mrb[0].mxu0 %v192
    %v295 = vpop.f32.mrb[0].mxu0
    %v296 = vadd.f32 0.0, %v295
    %v297 = vpop.f32.mrb[0].mxu0
    %298 = vdwg.mxu0
    %p299 = scmp.eq.s32.totalorder 0, 0
    // Predicated region
    $region10: #{tpu_custom_call.1} parent=1 // pred_check
      %p300 = pneg %p299
    $region11: #{tpu_custom_call.1} parent=1 // pred_check_branch
      %302 = sbr.rel (%p300) target = $region13
    $region12: #{tpu_custom_call.1} parent=1 // pred_region
      %vm303 = vcmask 7168
      %304 = vst.msk [vmem:[%s1] sm:$0xff] %vm303, %v124
      %305 = vst.msk [vmem:[%s1 + $0x8] sm:$0xff] %vm303, %v129
      %306 = vst.msk [vmem:[%s1 + $0x10] sm:$0xff] %vm303, %v134
      %307 = vst.msk [vmem:[%s1 + $0x18] sm:$0xff] %vm303, %v139
      %308 = vst.msk [vmem:[%s1 + $0x20] sm:$0xff] %vm303, %v144
      %309 = vst.msk [vmem:[%s1 + $0x28] sm:$0xff] %vm303, %v149
      %310 = vst.msk [vmem:[%s1 + $0x30] sm:$0xff] %vm303, %v154
      %311 = vst.msk [vmem:[%s1 + $0x38] sm:$0xff] %vm303, %v159
      %312 = vst.msk [vmem:[%s2] sm:$0xff] %vm303, %v261
      %313 = vst.msk [vmem:[%s2 + $0x8] sm:$0xff] %vm303, %v266
      %314 = vst.msk [vmem:[%s2 + $0x10] sm:$0xff] %vm303, %v271
      %315 = vst.msk [vmem:[%s2 + $0x18] sm:$0xff] %vm303, %v276
      %316 = vst.msk [vmem:[%s2 + $0x20] sm:$0xff] %vm303, %v281
      %317 = vst.msk [vmem:[%s2 + $0x28] sm:$0xff] %vm303, %v286
      %318 = vst.msk [vmem:[%s2 + $0x30] sm:$0xff] %vm303, %v291
      %319 = vst.msk [vmem:[%s2 + $0x38] sm:$0xff] %vm303, %v296
    $region13: #{tpu_custom_call.1} parent=1 // pred_fallthru
      _
    %p320 = scmp.gt.s32.totalorder 0, 0
    // Predicated region
    $region14: #{tpu_custom_call.1} parent=1 // pred_check
      %p321 = pneg %p320
    $region15: #{tpu_custom_call.1} parent=1 // pred_check_branch
      %323 = sbr.rel (%p321) target = $region17
    $region16: #{tpu_custom_call.1} parent=1 // pred_region
      %v324 = vld [vmem:[%s1] sm:$0xff]
      %v325 = vld [vmem:[%s1 + $0x8] sm:$0xff]
      %v326 = vld [vmem:[%s1 + $0x10] sm:$0xff]
      %v327 = vld [vmem:[%s1 + $0x18] sm:$0xff]
      %v328 = vld [vmem:[%s1 + $0x20] sm:$0xff]
      %v329 = vld [vmem:[%s1 + $0x28] sm:$0xff]
      %v330 = vld [vmem:[%s1 + $0x30] sm:$0xff]
      %v331 = vld [vmem:[%s1 + $0x38] sm:$0xff]
      %v332 = vadd.f32 %v324, %v124
      %v333 = vadd.f32 %v325, %v129
      %v334 = vadd.f32 %v326, %v134
      %v335 = vadd.f32 %v327, %v139
      %v336 = vadd.f32 %v328, %v144
      %v337 = vadd.f32 %v329, %v149
      %v338 = vadd.f32 %v330, %v154
      %v339 = vadd.f32 %v331, %v159
      %vm340 = vcmask 7168
      %341 = vst.msk [vmem:[%s1] sm:$0xff] %vm340, %v332
      %342 = vst.msk [vmem:[%s1 + $0x8] sm:$0xff] %vm340, %v333
      %343 = vst.msk [vmem:[%s1 + $0x10] sm:$0xff] %vm340, %v334
      %344 = vst.msk [vmem:[%s1 + $0x18] sm:$0xff] %vm340, %v335
      %345 = vst.msk [vmem:[%s1 + $0x20] sm:$0xff] %vm340, %v336
      %346 = vst.msk [vmem:[%s1 + $0x28] sm:$0xff] %vm340, %v337
      %347 = vst.msk [vmem:[%s1 + $0x30] sm:$0xff] %vm340, %v338
      %348 = vst.msk [vmem:[%s1 + $0x38] sm:$0xff] %vm340, %v339
      %v349 = vld [vmem:[%s2] sm:$0xff]
      %v350 = vld [vmem:[%s2 + $0x8] sm:$0xff]
      %v351 = vld [vmem:[%s2 + $0x10] sm:$0xff]
      %v352 = vld [vmem:[%s2 + $0x18] sm:$0xff]
      %v353 = vld [vmem:[%s2 + $0x20] sm:$0xff]
      %v354 = vld [vmem:[%s2 + $0x28] sm:$0xff]
      %v355 = vld [vmem:[%s2 + $0x30] sm:$0xff]
      %v356 = vld [vmem:[%s2 + $0x38] sm:$0xff]
      %v357 = vadd.f32 %v349, %v261
      %v358 = vadd.f32 %v350, %v266
      %v359 = vadd.f32 %v351, %v271
      %v360 = vadd.f32 %v352, %v276
      %v361 = vadd.f32 %v353, %v281
      %v362 = vadd.f32 %v354, %v286
      %v363 = vadd.f32 %v355, %v291
      %v364 = vadd.f32 %v356, %v296
      %365 = vst.msk [vmem:[%s2] sm:$0xff] %vm340, %v357
      %366 = vst.msk [vmem:[%s2 + $0x8] sm:$0xff] %vm340, %v358
      %367 = vst.msk [vmem:[%s2 + $0x10] sm:$0xff] %vm340, %v359
      %368 = vst.msk [vmem:[%s2 + $0x18] sm:$0xff] %vm340, %v360
      %369 = vst.msk [vmem:[%s2 + $0x20] sm:$0xff] %vm340, %v361
      %370 = vst.msk [vmem:[%s2 + $0x28] sm:$0xff] %vm340, %v362
      %371 = vst.msk [vmem:[%s2 + $0x30] sm:$0xff] %vm340, %v363
      %372 = vst.msk [vmem:[%s2 + $0x38] sm:$0xff] %vm340, %v364
    $region17: #{tpu_custom_call.1} parent=1 // pred_fallthru
      _
    // Predicated region
    $region18: #{tpu_custom_call.1} parent=1 // pred_check
      _
    $region19: #{tpu_custom_call.1} parent=1 // pred_check_branch
      %374 = sbr.rel (0) target = $region21
    $region20: #{tpu_custom_call.1} parent=1 // pred_region
      _
    $region21: #{tpu_custom_call.1} parent=1 // pred_fallthru
      _
    // Predicated region
    $region22: #{tpu_custom_call.1} parent=1 // pred_check
      _
    $region23: #{tpu_custom_call.1} parent=1 // pred_check_branch
      %376 = sbr.rel (0) target = $region25
    $region24: #{tpu_custom_call.1} parent=1 // pred_region
      _
    $region25: #{tpu_custom_call.1} parent=1 // pred_fallthru
      _
    // Predicated region
    $region26: #{tpu_custom_call.1} parent=1 // pred_check
      _
    $region27: #{tpu_custom_call.1} parent=1 // pred_check_branch
      %378 = sbr.rel (0) target = $region29
    $region28: #{tpu_custom_call.1} parent=1 // pred_region
      _
    $region29: #{tpu_custom_call.1} parent=1 // pred_fallthru
      _
    // Predicated region
    $region30: #{tpu_custom_call.1} parent=1 // pred_check
      _
    $region31: #{tpu_custom_call.1} parent=1 // pred_check_branch
      %380 = sbr.rel (0) target = $region33
    $region32: #{tpu_custom_call.1} parent=1 // pred_region
      _
    $region33: #{tpu_custom_call.1} parent=1 // pred_fallthru
      _
    %381 = vsyncpa [#allocation3], 1

</llo_original>
